<compile_context>
chip_gen: v7x
topology: tpu7x:2x2x1
jax: 0.10.0
libtpu: 0.0.40
codegen_flags: <defaults>
</compile_context>

<pallas_src>
from functools import partial

import jax
import jax.numpy as jnp
from jax.experimental import pallas as pl
from jax.experimental.pallas import tpu as pltpu


def _round_up(a, m):
    return (a + m - 1) // m * m


def _pinn_mlp_kernel(x_ref, w_ref, b_ref, out_ref):
    """Fused MLP forward on one batch tile (transposed, lane-dense layout).

    x_ref:   [P_in, tile]   zero-padded input features (features on sublanes,
                            batch on lanes), float32
    w_ref:   [L, P, P]      zero-padded weights (bf16), layer i is [out_i, in_i]
                            in the top-left corner
    b_ref:   [L, P, 1]      zero-padded biases (f32)
    out_ref: [n_out, tile]  lane-dense output slab (f32)
    """
    n_layers = w_ref.shape[0]
    p_in = x_ref.shape[0]
    h = x_ref[...]                                        # [P_in, tile] f32
    for i in range(n_layers):                             # static unroll (L small)
        w = w_ref[i]                                      # [P, P] bf16
        if i == 0:
            w = w[:, :p_in]                               # static slice [P, P_in]
        b = b_ref[i]                                      # [P, 1] f32 -> lane bcast
        # bf16 MXU operands, f32 accumulation; bias-add / tanh stay f32.
        h = jnp.dot(w, h.astype(jnp.bfloat16),
                    preferred_element_type=jnp.float32) + b
        if i < n_layers - 1:
            h = jnp.tanh(h)
    out_ref[...] = h[: out_ref.shape[0], :].astype(out_ref.dtype)


def _pack_params(weights, biases, P):
    """Pack per-layer [out, in] weights (bf16) and [out] biases (f32) into slabs."""
    L = len(weights)
    w_slab = jnp.zeros((L, P, P), dtype=jnp.bfloat16)
    b_slab = jnp.zeros((L, P, 1), dtype=jnp.float32)
    for i, (w, b) in enumerate(zip(weights, biases)):
        out_f, in_f = w.shape
        w_slab = w_slab.at[i, :out_f, :in_f].set(w.astype(jnp.bfloat16))
        b_slab = b_slab.at[i, :out_f, 0].set(b.astype(jnp.float32))
    return w_slab, b_slab


def _choose_tile(B, batch_tile, min_steps=4):
    """Largest lane-aligned tile <= batch_tile giving >= min_steps grid steps.

    min_steps=4 keeps >= 2 steps per TensorCore on v7x (2 cores) so the
    BlockSpec pipeline has something to overlap.
    """
    batch_tile = max(128, _round_up(int(batch_tile), 128))
    target = max(128, _round_up(pl.cdiv(B, min_steps), 128))
    return min(batch_tile, target)


@partial(jax.jit, static_argnames=("batch_tile",))
def pinn_forward(x, weights, biases, *, batch_tile=2048):
    """PINN MLP forward pass with a Pallas TPU kernel.

    x:       [B, num_inputs] float32
    weights: list of [out_i, in_i] float32 (PyTorch nn.Linear layout)
    biases:  list of [out_i]        float32
    returns: [B, num_outputs] float32
    """
    B, n_in = x.shape
    n_out = weights[-1].shape[0]
    L = len(weights)

    # Padded feature dimensions (sublane-aligned).
    P = _round_up(max([n_out] + [w.shape[0] for w in weights] + [n_in]), 8)
    P_in = _round_up(n_in, 8)          # input stream only padded to 8 sublanes

    tile = _choose_tile(B, batch_tile)
    B_pad = _round_up(B, tile)
    grid = (B_pad // tile,)

    # Wrapper-side layout plumbing (fused under jit): transpose + zero-pad.
    x_t = jnp.zeros((P_in, B_pad), dtype=jnp.float32)
    x_t = x_t.at[:n_in, :B].set(x.T.astype(jnp.float32))
    w_slab, b_slab = _pack_params(weights, biases, P)

    out_t = pl.pallas_call(
        _pinn_mlp_kernel,
        out_shape=jax.ShapeDtypeStruct((n_out, B_pad), jnp.float32),
        grid_spec=pltpu.PrefetchScalarGridSpec(
            num_scalar_prefetch=0,
            grid=grid,
            in_specs=[
                # batch tile of the transposed input (only P_in=8 rows)
                pl.BlockSpec((P_in, tile), lambda i: (0, i)),
                # parameter slabs: full array, constant block -> VMEM resident
                pl.BlockSpec((L, P, P), lambda i: (0, 0, 0)),
                pl.BlockSpec((L, P, 1), lambda i: (0, 0, 0)),
            ],
            out_specs=pl.BlockSpec((n_out, tile), lambda i: (0, i)),
        ),
        compiler_params=pltpu.CompilerParams(
            dimension_semantics=("parallel",)),
    )(x_t, w_slab, b_slab)

    # Drop batch padding and return in PyTorch's [B, num_outputs] layout.
    return out_t[:, :B].T


def init_pinn_params(key, num_inputs, num_layers, num_neurons, num_outputs):
    """Deterministic Xavier-normal weights (gain=1) and zero biases.

    Weights are kept in PyTorch's [out, in] layout.
    """
    dims = [num_inputs] + [num_neurons] * (num_layers + 1) + [num_outputs]
    weights, biases = [], []
    for fan_in, fan_out in zip(dims[:-1], dims[1:]):
        key, sub = jax.random.split(key)
        std = (2.0 / (fan_in + fan_out)) ** 0.5
        w = std * jax.random.normal(sub, (fan_out, fan_in), dtype=jnp.float32)
        b = jnp.zeros((fan_out,), dtype=jnp.float32)
        weights.append(w)
        biases.append(b)
    return weights, biases


def pinn_reference(x, weights, biases):
    """Plain-JAX f32 reference (PyTorch nn.Linear semantics) for sanity checking."""
    h = x
    for i, (w, b) in enumerate(zip(weights, biases)):
        h = h @ w.T + b
        if i < len(weights) - 1:
            h = jnp.tanh(h)
    return h


if __name__ == "__main__":
    # PINN-typical shapes: inputs (t, x, y) -> 1 output, 32-neuron hidden layers.
    num_inputs, num_layers, num_neurons, num_outputs = 3, 2, 32, 1
    batch = 2048  # tile=512 -> 4 grid steps -> >= 2 steps per v7x TensorCore

    key = jax.random.PRNGKey(0)
    key, xkey = jax.random.split(key)
    x = jax.random.normal(xkey, (batch, num_inputs), dtype=jnp.float32)

    weights, biases = init_pinn_params(
        key, num_inputs, num_layers, num_neurons, num_outputs)

    out = jax.block_until_ready(pinn_forward(x, weights, biases))
    ref = jax.block_until_ready(pinn_reference(x, weights, biases))

    assert out.shape == (batch, num_outputs)
    # bf16 MXU operands with f32 accumulation -> slightly looser tolerance.
    assert jnp.allclose(out, ref, atol=3e-2, rtol=3e-2), "mismatch vs reference"

    print("KERNEL_OK")
</pallas_src>

<mosaic_0001>
module attributes {stable_mosaic.version = 11 : i64} {
  func.func @_pinn_mlp_kernel(%arg0: i32, %arg1: memref<8x512xf32, #tpu.memory_space<vmem>>, %arg2: memref<4x32x32xbf16, #tpu.memory_space<vmem>>, %arg3: memref<4x32x1xf32, #tpu.memory_space<vmem>>, %arg4: memref<1x512xf32, #tpu.memory_space<vmem>>) attributes {dimension_semantics = [#tpu.dimension_semantics<parallel>], iteration_bounds = array<i64: 4>, scalar_prefetch = 0 : i64, scratch_operands = 0 : i64, tpu.core_type = #tpu.core_type<tc>, window_params = [{transform_indices = @transform_0, window_bounds = array<i64: 8, 512>}, {pipeline_mode = #tpu.pipeline_mode<synchronous>, transform_indices = @transform_1, window_bounds = array<i64: 4, 32, 32>}, {pipeline_mode = #tpu.pipeline_mode<synchronous>, transform_indices = @transform_2, window_bounds = array<i64: 4, 32, 1>}, {transform_indices = @transform_3, window_bounds = array<i64: 1, 512>}]} {
    %c0 = arith.constant 0 : index
    %c0_0 = arith.constant 0 : index
    %0 = vector.load %arg1[%c0, %c0_0] : memref<8x512xf32, #tpu.memory_space<vmem>>, vector<8x512xf32>
    %c0_1 = arith.constant 0 : index
    %c0_2 = arith.constant 0 : index
    %c0_3 = arith.constant 0 : index
    %1 = vector.load %arg2[%c0_1, %c0_2, %c0_3] : memref<4x32x32xbf16, #tpu.memory_space<vmem>>, vector<1x32x32xbf16>
    %2 = vector.shape_cast %1 : vector<1x32x32xbf16> to vector<32x32xbf16>
    %3 = vector.extract_strided_slice %2 {offsets = [0, 0], sizes = [32, 8], strides = [1, 1]} : vector<32x32xbf16> to vector<32x8xbf16>
    %c0_4 = arith.constant 0 : index
    %c0_5 = arith.constant 0 : index
    %c0_6 = arith.constant 0 : index
    %4 = vector.load %arg3[%c0_4, %c0_5, %c0_6] : memref<4x32x1xf32, #tpu.memory_space<vmem>>, vector<1x32x1xf32>
    %5 = vector.shape_cast %4 : vector<1x32x1xf32> to vector<32x1xf32>
    %6 = arith.truncf %0 : vector<8x512xf32> to vector<8x512xbf16>
    %cst = arith.constant dense<0.000000e+00> : vector<32x512xf32>
    %7 = tpu.matmul %3, %6, %cst {dimension_numbers = #tpu.dot_dimension_numbers<[1], [0], [0], [1], [0, 0, 1, 1], [], []>} : vector<32x8xbf16>, vector<8x512xbf16>, vector<32x512xf32> -> vector<32x512xf32>
    %8 = vector.broadcast %5 : vector<32x1xf32> to vector<32x512xf32>
    %9 = arith.addf %7, %8 : vector<32x512xf32>
    %10 = math.tanh %9 : vector<32x512xf32>
    %c1 = arith.constant 1 : index
    %c0_7 = arith.constant 0 : index
    %c0_8 = arith.constant 0 : index
    %11 = vector.load %arg2[%c1, %c0_7, %c0_8] : memref<4x32x32xbf16, #tpu.memory_space<vmem>>, vector<1x32x32xbf16>
    %12 = vector.shape_cast %11 : vector<1x32x32xbf16> to vector<32x32xbf16>
    %c1_9 = arith.constant 1 : index
    %c0_10 = arith.constant 0 : index
    %c0_11 = arith.constant 0 : index
    %13 = vector.load %arg3[%c1_9, %c0_10, %c0_11] : memref<4x32x1xf32, #tpu.memory_space<vmem>>, vector<1x32x1xf32>
    %14 = vector.shape_cast %13 : vector<1x32x1xf32> to vector<32x1xf32>
    %15 = arith.truncf %10 : vector<32x512xf32> to vector<32x512xbf16>
    %cst_12 = arith.constant dense<0.000000e+00> : vector<32x512xf32>
    %16 = tpu.matmul %12, %15, %cst_12 {dimension_numbers = #tpu.dot_dimension_numbers<[1], [0], [0], [1], [0, 0, 1, 1], [], []>} : vector<32x32xbf16>, vector<32x512xbf16>, vector<32x512xf32> -> vector<32x512xf32>
    %17 = vector.broadcast %14 : vector<32x1xf32> to vector<32x512xf32>
    %18 = arith.addf %16, %17 : vector<32x512xf32>
    %19 = math.tanh %18 : vector<32x512xf32>
    %c2 = arith.constant 2 : index
    %c0_13 = arith.constant 0 : index
    %c0_14 = arith.constant 0 : index
    %20 = vector.load %arg2[%c2, %c0_13, %c0_14] : memref<4x32x32xbf16, #tpu.memory_space<vmem>>, vector<1x32x32xbf16>
    %21 = vector.shape_cast %20 : vector<1x32x32xbf16> to vector<32x32xbf16>
    %c2_15 = arith.constant 2 : index
    %c0_16 = arith.constant 0 : index
    %c0_17 = arith.constant 0 : index
    %22 = vector.load %arg3[%c2_15, %c0_16, %c0_17] : memref<4x32x1xf32, #tpu.memory_space<vmem>>, vector<1x32x1xf32>
    %23 = vector.shape_cast %22 : vector<1x32x1xf32> to vector<32x1xf32>
    %24 = arith.truncf %19 : vector<32x512xf32> to vector<32x512xbf16>
    %cst_18 = arith.constant dense<0.000000e+00> : vector<32x512xf32>
    %25 = tpu.matmul %21, %24, %cst_18 {dimension_numbers = #tpu.dot_dimension_numbers<[1], [0], [0], [1], [0, 0, 1, 1], [], []>} : vector<32x32xbf16>, vector<32x512xbf16>, vector<32x512xf32> -> vector<32x512xf32>
    %26 = vector.broadcast %23 : vector<32x1xf32> to vector<32x512xf32>
    %27 = arith.addf %25, %26 : vector<32x512xf32>
    %28 = math.tanh %27 : vector<32x512xf32>
    %c3 = arith.constant 3 : index
    %c0_19 = arith.constant 0 : index
    %c0_20 = arith.constant 0 : index
    %29 = vector.load %arg2[%c3, %c0_19, %c0_20] : memref<4x32x32xbf16, #tpu.memory_space<vmem>>, vector<1x32x32xbf16>
    %30 = vector.shape_cast %29 : vector<1x32x32xbf16> to vector<32x32xbf16>
    %c3_21 = arith.constant 3 : index
    %c0_22 = arith.constant 0 : index
    %c0_23 = arith.constant 0 : index
    %31 = vector.load %arg3[%c3_21, %c0_22, %c0_23] : memref<4x32x1xf32, #tpu.memory_space<vmem>>, vector<1x32x1xf32>
    %32 = vector.shape_cast %31 : vector<1x32x1xf32> to vector<32x1xf32>
    %33 = arith.truncf %28 : vector<32x512xf32> to vector<32x512xbf16>
    %cst_24 = arith.constant dense<0.000000e+00> : vector<32x512xf32>
    %34 = tpu.matmul %30, %33, %cst_24 {dimension_numbers = #tpu.dot_dimension_numbers<[1], [0], [0], [1], [0, 0, 1, 1], [], []>} : vector<32x32xbf16>, vector<32x512xbf16>, vector<32x512xf32> -> vector<32x512xf32>
    %35 = vector.broadcast %32 : vector<32x1xf32> to vector<32x512xf32>
    %36 = arith.addf %34, %35 : vector<32x512xf32>
    %37 = vector.extract_strided_slice %36 {offsets = [0, 0], sizes = [1, 512], strides = [1, 1]} : vector<32x512xf32> to vector<1x512xf32>
    %c0_25 = arith.constant 0 : index
    %c0_26 = arith.constant 0 : index
    %38 = vector.load %arg4[%c0_25, %c0_26] : memref<1x512xf32, #tpu.memory_space<vmem>>, vector<1x512xf32>
    tpu.vector_store %arg4[%c0_25, %c0_26], %37 {strides = array<i32>} : memref<1x512xf32, #tpu.memory_space<vmem>>, vector<1x512xf32>,
    return
  }
  func.func @transform_0(%arg0: i32) -> (i32, i32) {
    %c0_i32 = arith.constant 0 : i32
    %c0_i32_0 = arith.constant 0 : i32
    return %c0_i32, %arg0 : i32, i32
  }
  func.func @transform_1(%arg0: i32) -> (i32, i32, i32) {
    %c0_i32 = arith.constant 0 : i32
    %c0_i32_0 = arith.constant 0 : i32
    %c0_i32_1 = arith.constant 0 : i32
    %c0_i32_2 = arith.constant 0 : i32
    return %c0_i32, %c0_i32_0, %c0_i32_1 : i32, i32, i32
  }
  func.func @transform_2(%arg0: i32) -> (i32, i32, i32) {
    %c0_i32 = arith.constant 0 : i32
    %c0_i32_0 = arith.constant 0 : i32
    %c0_i32_1 = arith.constant 0 : i32
    %c0_i32_2 = arith.constant 0 : i32
    return %c0_i32, %c0_i32_0, %c0_i32_1 : i32, i32, i32
  }
  func.func @transform_3(%arg0: i32) -> (i32, i32) {
    %c0_i32 = arith.constant 0 : i32
    %c0_i32_0 = arith.constant 0 : i32
    return %c0_i32, %arg0 : i32, i32
  }
}

</mosaic_0001>

<llo_original>
// kernel: pinn_forward.1
$region0: #{pinn_forward.1}
  #allocation0 [shape = 'u32[]', space=smem, size = 0x4, offset = 0x4, fixed_abs, tag = 'smem constant byte address 0x4 - core index']
  #allocation1 [shape = 'u32[144,128]{1,0:T(1,128)}', space=vmem, size = 0x12000, scoped, tag = 'internal scratch']
  %s0 = inlined_call_operand.vmem [shape: f32[8,2048], index: 0, kind: input, shape index: {}]
  %s1 = inlined_call_operand.vmem [shape: bf16[4,32,32], index: 1, kind: input, shape index: {}]
  %s2 = inlined_call_operand.vmem [shape: f32[4,32,1], index: 2, kind: input, shape index: {}]
  %s3 = inlined_call_operand.hbm [shape: f32[1,2048], index: 3, kind: output, shape index: {}]
  %s4 = sld [smem:[#allocation0]]
  $region45: #{pinn_forward.1} parent=0
    _
  %s6 = ssub.s32 1, %s4
  %s7 = scalar_select 0, %s6, %s4
  $region1: #{pinn_forward.1} parent=0
    #allocation2 [shape = 'u8[4096]{0}', space=vmem, size = 0x1000, scoped, tag = 'output window, operand 0']
    #allocation3 [shape = 's32[2]{0}', space=sflag, size = 0x8, scoped, tag = 'scoped memory for pinn_forward.1']
    %8 = vsyncpa [#allocation3], 0
    %s9 = scalar_lea.sflag [#allocation3], 1
    %10 = vsyncpa %s9, 0
    loop: start=0, step=1, limit=6
    $region2: #{pinn_forward.1} parent=1 // loop_pre_header
      _
    $region3: #{pinn_forward.1} parent=1 // loop_header
      %s12 = sphi 0, %s16
      %p13 = scmp.ge.s32.totalorder %s12, 6
      %s22 = sphi 0, %s24
      %s25 = sphi 0, %s22
      %s26 = sphi 0, %s25
      %s42 = sphi 0, %s26
      %s46 = sphi 0, %s46
      %s48 = sphi 0, %s46
      %s49 = sphi 0, %s48
      %s63 = sphi 0, %s49
      %s67 = sphi 0, %s67
      %s69 = sphi 0, %s67
      %s70 = sphi 0, %s69
      %s84 = sphi 0, %s70
      %s90 = sphi 0, %s92
      %s93 = sphi 0, %s90
      %s94 = sphi 0, %s93
      %s110 = sphi 0, %s94
    $region4: #{pinn_forward.1} parent=1 // loop_header_branch
      %15 = sbr.rel (%p13) target = $region8
    $region5: #{pinn_forward.1} parent=1 // loop_body
      %s17 = ssub.s32 %s12, 1
      %s18 = ssub.s32 %s12, 2
      %s19 = sadd.s32 %s12, 1
      %s20 = ssub.s32 %s12, %s19
      %p21 = scmp.eq.s32.totalorder %s20, 0
      %s23 = sadd.s32 %s22, 1
      %s24 = scalar_select %p21, %s22, %s23
      %p27 = pneg %p21
      %p28 = scmp.eq.s32.totalorder %s12, 3
      %p29 = por %p27, %p28
      %p30 = scmp.ne.s32.totalorder %s22, %s25
      %p31 = scmp.eq.s32.totalorder %s12, 0
      %p32 = por %p30, %p31
      %p33 = scmp.ne.s32.totalorder %s22, %s25
      %p34 = scmp.eq.s32.totalorder %s17, 3
      %p35 = por %p33, %p34
      %p36 = scmp.ne.s32.totalorder %s25, %s26
      %p37 = scmp.eq.s32.totalorder %s17, 0
      %p38 = por %p36, %p37
      %p39 = scmp.ne.s32.totalorder %s25, %s26
      %p40 = scmp.eq.s32.totalorder %s18, 3
      %p41 = por %p39, %p40
      %p43 = scmp.ne.s32.totalorder %s26, %s42
      %p44 = scmp.eq.s32.totalorder %s18, 0
      %p45 = por %p43, %p44
      %s47 = sadd.s32 %s46, 1
      %p50 = scmp.eq.s32.totalorder %s12, 3
      %p51 = scmp.ne.s32.totalorder %s46, %s48
      %p52 = scmp.eq.s32.totalorder %s12, 0
      %p53 = por %p51, %p52
      %p54 = scmp.ne.s32.totalorder %s46, %s48
      %p55 = scmp.eq.s32.totalorder %s17, 3
      %p56 = por %p54, %p55
      %p57 = scmp.ne.s32.totalorder %s48, %s49
      %p58 = scmp.eq.s32.totalorder %s17, 0
      %p59 = por %p57, %p58
      %p60 = scmp.ne.s32.totalorder %s48, %s49
      %p61 = scmp.eq.s32.totalorder %s18, 3
      %p62 = por %p60, %p61
      %p64 = scmp.ne.s32.totalorder %s49, %s63
      %p65 = scmp.eq.s32.totalorder %s18, 0
      %p66 = por %p64, %p65
      %s68 = sadd.s32 %s67, 1
      %p71 = scmp.eq.s32.totalorder %s12, 3
      %p72 = scmp.ne.s32.totalorder %s67, %s69
      %p73 = scmp.eq.s32.totalorder %s12, 0
      %p74 = por %p72, %p73
      %p75 = scmp.ne.s32.totalorder %s67, %s69
      %p76 = scmp.eq.s32.totalorder %s17, 3
      %p77 = por %p75, %p76
      %p78 = scmp.ne.s32.totalorder %s69, %s70
      %p79 = scmp.eq.s32.totalorder %s17, 0
      %p80 = por %p78, %p79
      %p81 = scmp.ne.s32.totalorder %s69, %s70
      %p82 = scmp.eq.s32.totalorder %s18, 3
      %p83 = por %p81, %p82
      %p85 = scmp.ne.s32.totalorder %s70, %s84
      %p86 = scmp.eq.s32.totalorder %s18, 0
      %p87 = por %p85, %p86
      %s88 = ssub.s32 %s12, %s19
      %p89 = scmp.eq.s32.totalorder %s88, 0
      %s91 = sadd.s32 %s90, 1
      %s92 = scalar_select %p89, %s90, %s91
      %p95 = pneg %p89
      %p96 = scmp.eq.s32.totalorder %s12, 3
      %p97 = por %p95, %p96
      %p98 = scmp.ne.s32.totalorder %s90, %s93
      %p99 = scmp.eq.s32.totalorder %s12, 0
      %p100 = por %p98, %p99
      %p101 = scmp.ne.s32.totalorder %s90, %s93
      %p102 = scmp.eq.s32.totalorder %s17, 3
      %p103 = por %p101, %p102
      %p104 = scmp.ne.s32.totalorder %s93, %s94
      %p105 = scmp.eq.s32.totalorder %s17, 0
      %p106 = por %p104, %p105
      %p107 = scmp.ne.s32.totalorder %s93, %s94
      %p108 = scmp.eq.s32.totalorder %s18, 3
      %p109 = por %p107, %p108
      %p111 = scmp.ne.s32.totalorder %s94, %s110
      %p112 = scmp.eq.s32.totalorder %s18, 0
      %p113 = por %p111, %p112
      %p114 = scmp.le.s32.totalorder 1, %s12
      %p115 = scmp.lt.s32.totalorder %s12, 5
      %p116 = pnand %p114, %p115
      %p117 = pneg %p116
      // Predicated region
      $region9: #{pinn_forward.1} parent=5 // pred_check
        _
      $region10: #{pinn_forward.1} parent=5 // pred_check_branch
        %119 = sbr.rel (%p116) target = $region12
      $region11: #{pinn_forward.1} parent=5 // pred_region
        %s120 = ssub.s32 %s12, 1
        // Predicated region
        $region13: #{pinn_forward.1} parent=11 // pred_check
          %p121 = pneg %p59
        $region14: #{pinn_forward.1} parent=11 // pred_check_branch
          %123 = sbr.rel (%p121) target = $region16
        $region15: #{pinn_forward.1} parent=11 // pred_region
          _
        $region16: #{pinn_forward.1} parent=11 // pred_fallthru
          _
        // Predicated region
        $region17: #{pinn_forward.1} parent=11 // pred_check
          %p124 = pneg %p80
        $region18: #{pinn_forward.1} parent=11 // pred_check_branch
          %126 = sbr.rel (%p124) target = $region20
        $region19: #{pinn_forward.1} parent=11 // pred_region
          _
        $region20: #{pinn_forward.1} parent=11 // pred_fallthru
          _
      $region12: #{pinn_forward.1} parent=5 // pred_fallthru
        _
      %p127 = scmp.lt.s32.totalorder %s12, 4
      // Predicated region
      $region21: #{pinn_forward.1} parent=5 // pred_check
        %p128 = pneg %p127
      $region22: #{pinn_forward.1} parent=5 // pred_check_branch
        %130 = sbr.rel (%p128) target = $region24
      $region23: #{pinn_forward.1} parent=5 // pred_region
        // Predicated region
        $region25: #{pinn_forward.1} parent=23 // pred_check
          %p131 = pneg %p32
        $region26: #{pinn_forward.1} parent=23 // pred_check_branch
          %133 = sbr.rel (%p131) target = $region28
        $region27: #{pinn_forward.1} parent=23 // pred_region
          %s134 = smul.u32 4, %s12
          %p135 = scmp.lt.s32.totalorder %s134, 15
          %s136 = scalar_select %p135, %s134, 15
          %s137 = smul.addr %s136, 8
          %s138 = scalar_lea.vmem %s0, %s137
          %s139 = smul.u32 4, %s12
        $region28: #{pinn_forward.1} parent=23 // pred_fallthru
          _
      $region24: #{pinn_forward.1} parent=5 // pred_fallthru
        _
      %p140 = scmp.le.s32.totalorder 1, %s12
      %p141 = scmp.lt.s32.totalorder %s12, 5
      %p142 = pnand %p140, %p141
      %p143 = pneg %p142
      // Predicated region
      $region29: #{pinn_forward.1} parent=5 // pred_check
        _
      $region30: #{pinn_forward.1} parent=5 // pred_check_branch
        %145 = sbr.rel (%p142) target = $region32
      $region31: #{pinn_forward.1} parent=5 // pred_region
        %s146 = ssub.s32 %s12, 1
        %s147 = smul.u32 4, %s17
        %p148 = scmp.lt.s32.totalorder %s147, 15
        %s149 = scalar_select %p148, %s147, 15
        %s150 = smul.addr %s149, 8
        %s151 = scalar_lea.vmem %s0, %s150
        %p152 = pneg %p38
        %p153 = pneg %p35
        %p154 = pneg %p59
        %p155 = pneg %p56
        %p156 = pneg %p80
        %p157 = pneg %p77
        %p158 = pneg %p106
        %p159 = pneg %p103
        %s160 = sand.u32 %s93, 1
        %s161 = scalar_lea.sflag [#allocation3], %s160
        %s162 = sand.u32 %s93, 1
        %s163 = smul.addr %s162, 4
        %s164 = scalar_lea.vmem [#allocation2], %s163
        %s165 = smul.u32 4, %s17
        %p166 = scmp.lt.s32.totalorder %s165, 15
        %s167 = scalar_select %p166, %s165, 15
        %s168 = smul.addr %s167, 8
        %s169 = scalar_lea.vmem %s0, %s168
        %s170 = smul.u32 4, %s17
        %s171 = smul.u32 4, %s17
        %v173 = vld [vmem:[%s169] sm:$0xff]
        %v174 = vld [vmem:[%s169 + $0x8] sm:$0xff]
        %v175 = vld [vmem:[%s169 + $0x10] sm:$0xff]
        %v176 = vld [vmem:[%s169 + $0x18] sm:$0xff]
        %v177 = vld [vmem:[%s1] sm:$0xf]
        %v178 = vld [vmem:[%s1 + $0x4] sm:$0xf]
        %v179 = vld [vmem:[%s1 + $0x8] sm:$0xf]
        %v180 = vld [vmem:[%s1 + $0xc] sm:$0xf]
        %v181 = vld [vmem:[%s2] sm:$0xff]
        %v182 = vld [vmem:[%s2 + $0x8] sm:$0xff]
        %v183 = vld [vmem:[%s2 + $0x10] sm:$0xff]
        %v184 = vld [vmem:[%s2 + $0x18] sm:$0xff]
        %v185 = vpack.c.bf16 %v173, %v173
        %v186 = vpack.c.bf16 %v174, %v174
        %v187 = vpack.c.bf16 %v175, %v175
        %v188 = vpack.c.bf16 %v176, %v176
        %190 = vset.pattern.permute.xlu0 0
        %191 = vperm.xlu0 %190, %v181
        %v192 = vpop.permute.xlu0 %191
        %195 = vset.pattern.permute.xlu0 0
        %196 = vperm.xlu0 %195, %v182
        %v197 = vpop.permute.xlu0 %196
        %200 = vset.pattern.permute.xlu0 0
        %201 = vperm.xlu0 %200, %v183
        %v202 = vpop.permute.xlu0 %201
        %205 = vset.pattern.permute.xlu0 0
        %206 = vperm.xlu0 %205, %v184
        %v207 = vpop.permute.xlu0 %206
        %v213 = vunpack.c.l.b16 %v177
        %v214 = vunpack.c.l.b16 %v178
        %v215 = vunpack.c.l.b16 %v179
        %v216 = vunpack.c.l.b16 %v180
        %v217 = vpack.c.b16 %v214, %v213
        %v218 = vpack.c.b16 %v216, %v215
        %vm219 = vcmask 64512
        %v221 = vsel %vm219, %v217, 0
        %v224 = vsel %vm219, %v218, 0
        %vm226 = vcmask 1043456
        %v228 = vsel %vm226, %v185, 0
        %v231 = vsel %vm226, %v186, 0
        %v234 = vsel %vm226, %v187, 0
        %v237 = vsel %vm226, %v188, 0
        %239 = vmatprep.subr.bf16.mxu0 %v231
        %240 = vmatpush1.bf16.msra.mxu0 %v228
        %241 = vmatprep.subr.bf16.mxu0 0
        %242 = vmatpush1.bf16.msra.mxu0 0
        %243 = vmatprep.subr.bf16.mxu0 0
        %244 = vmatpush1.bf16.msra.mxu0 0
        %245 = vmatprep.subr.bf16.mxu0 0
        %246 = vmatpush1.bf16.msra.mxu0 0
        %247 = vmatprep.subr.bf16.mxu0 0
        %248 = vmatpush1.bf16.msra.mxu0 0
        %249 = vmatprep.subr.bf16.mxu0 0
        %250 = vmatpush1.bf16.msra.mxu0 0
        %251 = vmatprep.subr.bf16.mxu0 0
        %252 = vmatpush1.bf16.msra.mxu0 0
        %253 = vmatprep.subr.bf16.mxu0 0
        %254 = vmatpush1.bf16.msra.mxu0 0
        %255 = vmatprep.subr.bf16.mxu0 0
        %256 = vmatpush1.bf16.msra.mxu0 0
        %257 = vmatprep.subr.bf16.mxu0 0
        %258 = vmatpush1.bf16.msra.mxu0 0
        %259 = vmatprep.subr.bf16.mxu0 0
        %260 = vmatpush1.bf16.msra.mxu0 0
        %261 = vmatprep.subr.bf16.mxu0 0
        %262 = vmatpush1.bf16.msra.mxu0 0
        %263 = vmatprep.subr.bf16.mxu0 0
        %264 = vmatpush1.bf16.msra.mxu0 0
        %265 = vmatprep.subr.bf16.mxu0 0
        %266 = vmatpush1.bf16.msra.mxu0 0
        %267 = vmatprep.subr.bf16.mxu0 0
        %268 = vmatpush1.bf16.msra.mxu0 0
        %269 = vmatprep.subr.bf16.mxu0 0
        %270 = vmatpush1.bf16.msra.mxu0 0
        %271 = vmatprep.mubr.bf16.mxu0 0
        %272 = vmatmul.mubr.bf16.gmra.mrb[0].mxu0 %v221
        %v273 = vpop.f32.mrb[0].mxu0
        %v274 = vadd.f32 %v192, %v273
        %v275 = vpop.f32.mrb[0].mxu0
        %v276 = vadd.f32 %v192, %v275
        %v277 = vpop.f32.mrb[0].mxu0
        %v278 = vadd.f32 %v197, %v277
        %v279 = vpop.f32.mrb[0].mxu0
        %v280 = vadd.f32 %v197, %v279
        %281 = vmatprep.mubr.bf16.mxu0 0
        %282 = vmatmul.mubr.bf16.gmra.mrb[0].mxu0 %v224
        %v283 = vpop.f32.mrb[0].mxu0
        %v284 = vadd.f32 %v202, %v283
        %v285 = vpop.f32.mrb[0].mxu0
        %v286 = vadd.f32 %v202, %v285
        %v287 = vpop.f32.mrb[0].mxu0
        %v288 = vadd.f32 %v207, %v287
        %v289 = vpop.f32.mrb[0].mxu0
        %v290 = vadd.f32 %v207, %v289
        %291 = vdwg.mxu0
        %292 = vmatprep.subr.bf16.mxu0 %v237
        %293 = vmatpush1.bf16.msra.mxu0 %v234
        %294 = vmatprep.subr.bf16.mxu0 0
        %295 = vmatpush1.bf16.msra.mxu0 0
        %296 = vmatprep.subr.bf16.mxu0 0
        %297 = vmatpush1.bf16.msra.mxu0 0
        %298 = vmatprep.subr.bf16.mxu0 0
        %299 = vmatpush1.bf16.msra.mxu0 0
        %300 = vmatprep.subr.bf16.mxu0 0
        %301 = vmatpush1.bf16.msra.mxu0 0
        %302 = vmatprep.subr.bf16.mxu0 0
        %303 = vmatpush1.bf16.msra.mxu0 0
        %304 = vmatprep.subr.bf16.mxu0 0
        %305 = vmatpush1.bf16.msra.mxu0 0
        %306 = vmatprep.subr.bf16.mxu0 0
        %307 = vmatpush1.bf16.msra.mxu0 0
        %308 = vmatprep.subr.bf16.mxu0 0
        %309 = vmatpush1.bf16.msra.mxu0 0
        %310 = vmatprep.subr.bf16.mxu0 0
        %311 = vmatpush1.bf16.msra.mxu0 0
        %312 = vmatprep.subr.bf16.mxu0 0
        %313 = vmatpush1.bf16.msra.mxu0 0
        %314 = vmatprep.subr.bf16.mxu0 0
        %315 = vmatpush1.bf16.msra.mxu0 0
        %316 = vmatprep.subr.bf16.mxu0 0
        %317 = vmatpush1.bf16.msra.mxu0 0
        %318 = vmatprep.subr.bf16.mxu0 0
        %319 = vmatpush1.bf16.msra.mxu0 0
        %320 = vmatprep.subr.bf16.mxu0 0
        %321 = vmatpush1.bf16.msra.mxu0 0
        %322 = vmatprep.subr.bf16.mxu0 0
        %323 = vmatpush1.bf16.msra.mxu0 0
        %324 = vmatprep.mubr.bf16.mxu0 0
        %325 = vmatmul.mubr.bf16.gmra.mrb[0].mxu0 %v221
        %v326 = vpop.f32.mrb[0].mxu0
        %v327 = vadd.f32 %v192, %v326
        %v328 = vpop.f32.mrb[0].mxu0
        %v329 = vadd.f32 %v192, %v328
        %v330 = vpop.f32.mrb[0].mxu0
        %v331 = vadd.f32 %v197, %v330
        %v332 = vpop.f32.mrb[0].mxu0
        %v333 = vadd.f32 %v197, %v332
        %334 = vmatprep.mubr.bf16.mxu0 0
        %335 = vmatmul.mubr.bf16.gmra.mrb[0].mxu0 %v224
        %v336 = vpop.f32.mrb[0].mxu0
        %v337 = vadd.f32 %v202, %v336
        %v338 = vpop.f32.mrb[0].mxu0
        %v339 = vadd.f32 %v202, %v338
        %v340 = vpop.f32.mrb[0].mxu0
        %v341 = vadd.f32 %v207, %v340
        %v342 = vpop.f32.mrb[0].mxu0
        %v343 = vadd.f32 %v207, %v342
        %344 = vdwg.mxu0
        %v345 = vtanh.pop %v274
        %v346 = vtanh.pop %v276
        %v347 = vtanh.pop %v327
        %v348 = vtanh.pop %v329
        %v349 = vtanh.pop %v278
        %v350 = vtanh.pop %v280
        %v351 = vtanh.pop %v331
        %v352 = vtanh.pop %v333
        %v353 = vtanh.pop %v284
        %v354 = vtanh.pop %v286
        %v355 = vtanh.pop %v337
        %v356 = vtanh.pop %v339
        %v357 = vtanh.pop %v288
        %v358 = vtanh.pop %v290
        %v359 = vtanh.pop %v341
        %v360 = vtanh.pop %v343
        %s361 = scalar_lea.vmem %s1, 16
        %v362 = vld [vmem:[%s361] sm:$0xf]
        %v363 = vld [vmem:[%s361 + $0x4] sm:$0xf]
        %v364 = vld [vmem:[%s361 + $0x8] sm:$0xf]
        %v365 = vld [vmem:[%s361 + $0xc] sm:$0xf]
        %s366 = scalar_lea.vmem %s2, 32
        %v367 = vld [vmem:[%s366] sm:$0xff]
        %v368 = vld [vmem:[%s366 + $0x8] sm:$0xff]
        %v369 = vld [vmem:[%s366 + $0x10] sm:$0xff]
        %v370 = vld [vmem:[%s366 + $0x18] sm:$0xff]
        %v371 = vpack.c.bf16 %v349, %v345
        %v372 = vpack.c.bf16 %v350, %v346
        %v373 = vpack.c.bf16 %v351, %v347
        %v374 = vpack.c.bf16 %v352, %v348
        %v375 = vpack.c.bf16 %v357, %v353
        %v376 = vpack.c.bf16 %v358, %v354
        %v377 = vpack.c.bf16 %v359, %v355
        %v378 = vpack.c.bf16 %v360, %v356
        %380 = vset.pattern.permute.xlu0 0
        %381 = vperm.xlu0 %380, %v367
        %v382 = vpop.permute.xlu0 %381
        %385 = vset.pattern.permute.xlu0 0
        %386 = vperm.xlu0 %385, %v368
        %v387 = vpop.permute.xlu0 %386
        %390 = vset.pattern.permute.xlu0 0
        %391 = vperm.xlu0 %390, %v369
        %v392 = vpop.permute.xlu0 %391
        %395 = vset.pattern.permute.xlu0 0
        %396 = vperm.xlu0 %395, %v370
        %v397 = vpop.permute.xlu0 %396
        %v403 = vunpack.c.l.b16 %v362
        %v404 = vunpack.c.l.b16 %v363
        %v405 = vunpack.c.l.b16 %v364
        %v406 = vunpack.c.l.b16 %v365
        %v407 = vpack.c.b16 %v404, %v403
        %v408 = vpack.c.b16 %v406, %v405
        %vm409 = vcmask 261120
        %v411 = vsel %vm409, %v407, 0
        %v414 = vsel %vm409, %v408, 0
        %416 = vmatprep.subr.bf16.mxu0 %v372
        %417 = vmatpush1.bf16.msra.mxu0 %v371
        %418 = vmatprep.subr.bf16.mxu0 %v376
        %419 = vmatpush1.bf16.msra.mxu0 %v375
        %420 = vmatprep.subr.bf16.mxu0 0
        %421 = vmatpush1.bf16.msra.mxu0 0
        %422 = vmatprep.subr.bf16.mxu0 0
        %423 = vmatpush1.bf16.msra.mxu0 0
        %424 = vmatprep.subr.bf16.mxu0 0
        %425 = vmatpush1.bf16.msra.mxu0 0
        %426 = vmatprep.subr.bf16.mxu0 0
        %427 = vmatpush1.bf16.msra.mxu0 0
        %428 = vmatprep.subr.bf16.mxu0 0
        %429 = vmatpush1.bf16.msra.mxu0 0
        %430 = vmatprep.subr.bf16.mxu0 0
        %431 = vmatpush1.bf16.msra.mxu0 0
        %432 = vmatprep.subr.bf16.mxu0 0
        %433 = vmatpush1.bf16.msra.mxu0 0
        %434 = vmatprep.subr.bf16.mxu0 0
        %435 = vmatpush1.bf16.msra.mxu0 0
        %436 = vmatprep.subr.bf16.mxu0 0
        %437 = vmatpush1.bf16.msra.mxu0 0
        %438 = vmatprep.subr.bf16.mxu0 0
        %439 = vmatpush1.bf16.msra.mxu0 0
        %440 = vmatprep.subr.bf16.mxu0 0
        %441 = vmatpush1.bf16.msra.mxu0 0
        %442 = vmatprep.subr.bf16.mxu0 0
        %443 = vmatpush1.bf16.msra.mxu0 0
        %444 = vmatprep.subr.bf16.mxu0 0
        %445 = vmatpush1.bf16.msra.mxu0 0
        %446 = vmatprep.subr.bf16.mxu0 0
        %447 = vmatpush1.bf16.msra.mxu0 0
        %448 = vmatprep.mubr.bf16.mxu0 0
        %449 = vmatmul.mubr.bf16.gmra.mrb[0].mxu0 %v411
        %v450 = vpop.f32.mrb[0].mxu0
        %v451 = vadd.f32 %v382, %v450
        %v452 = vpop.f32.mrb[0].mxu0
        %v453 = vadd.f32 %v382, %v452
        %v454 = vpop.f32.mrb[0].mxu0
        %v455 = vadd.f32 %v387, %v454
        %v456 = vpop.f32.mrb[0].mxu0
        %v457 = vadd.f32 %v387, %v456
        %458 = vmatprep.mubr.bf16.mxu0 0
        %459 = vmatmul.mubr.bf16.gmra.mrb[0].mxu0 %v414
        %v460 = vpop.f32.mrb[0].mxu0
        %v461 = vadd.f32 %v392, %v460
        %v462 = vpop.f32.mrb[0].mxu0
        %v463 = vadd.f32 %v392, %v462
        %v464 = vpop.f32.mrb[0].mxu0
        %v465 = vadd.f32 %v397, %v464
        %v466 = vpop.f32.mrb[0].mxu0
        %v467 = vadd.f32 %v397, %v466
        %468 = vdwg.mxu0
        %469 = vmatprep.subr.bf16.mxu0 %v374
        %470 = vmatpush1.bf16.msra.mxu0 %v373
        %471 = vmatprep.subr.bf16.mxu0 %v378
        %472 = vmatpush1.bf16.msra.mxu0 %v377
        %473 = vmatprep.subr.bf16.mxu0 0
        %474 = vmatpush1.bf16.msra.mxu0 0
        %475 = vmatprep.subr.bf16.mxu0 0
        %476 = vmatpush1.bf16.msra.mxu0 0
        %477 = vmatprep.subr.bf16.mxu0 0
        %478 = vmatpush1.bf16.msra.mxu0 0
        %479 = vmatprep.subr.bf16.mxu0 0
        %480 = vmatpush1.bf16.msra.mxu0 0
        %481 = vmatprep.subr.bf16.mxu0 0
        %482 = vmatpush1.bf16.msra.mxu0 0
        %483 = vmatprep.subr.bf16.mxu0 0
        %484 = vmatpush1.bf16.msra.mxu0 0
        %485 = vmatprep.subr.bf16.mxu0 0
        %486 = vmatpush1.bf16.msra.mxu0 0
        %487 = vmatprep.subr.bf16.mxu0 0
        %488 = vmatpush1.bf16.msra.mxu0 0
        %489 = vmatprep.subr.bf16.mxu0 0
        %490 = vmatpush1.bf16.msra.mxu0 0
        %491 = vmatprep.subr.bf16.mxu0 0
        %492 = vmatpush1.bf16.msra.mxu0 0
        %493 = vmatprep.subr.bf16.mxu0 0
        %494 = vmatpush1.bf16.msra.mxu0 0
        %495 = vmatprep.subr.bf16.mxu0 0
        %496 = vmatpush1.bf16.msra.mxu0 0
        %497 = vmatprep.subr.bf16.mxu0 0
        %498 = vmatpush1.bf16.msra.mxu0 0
        %499 = vmatprep.subr.bf16.mxu0 0
        %500 = vmatpush1.bf16.msra.mxu0 0
        %501 = vmatprep.mubr.bf16.mxu0 0
        %502 = vmatmul.mubr.bf16.gmra.mrb[0].mxu0 %v411
        %v503 = vpop.f32.mrb[0].mxu0
        %v504 = vadd.f32 %v382, %v503
        %v505 = vpop.f32.mrb[0].mxu0
        %v506 = vadd.f32 %v382, %v505
        %v507 = vpop.f32.mrb[0].mxu0
        %v508 = vadd.f32 %v387, %v507
        %v509 = vpop.f32.mrb[0].mxu0
        %v510 = vadd.f32 %v387, %v509
        %511 = vmatprep.mubr.bf16.mxu0 0
        %512 = vmatmul.mubr.bf16.gmra.mrb[0].mxu0 %v414
        %v513 = vpop.f32.mrb[0].mxu0
        %v514 = vadd.f32 %v392, %v513
        %v515 = vpop.f32.mrb[0].mxu0
        %v516 = vadd.f32 %v392, %v515
        %v517 = vpop.f32.mrb[0].mxu0
        %v518 = vadd.f32 %v397, %v517
        %v519 = vpop.f32.mrb[0].mxu0
        %v520 = vadd.f32 %v397, %v519
        %521 = vdwg.mxu0
        %v522 = vtanh.pop %v451
        %v523 = vtanh.pop %v453
        %v524 = vtanh.pop %v504
        %v525 = vtanh.pop %v506
        %v526 = vtanh.pop %v455
        %v527 = vtanh.pop %v457
        %v528 = vtanh.pop %v508
        %v529 = vtanh.pop %v510
        %v530 = vtanh.pop %v461
        %v531 = vtanh.pop %v463
        %v532 = vtanh.pop %v514
        %v533 = vtanh.pop %v516
        %v534 = vtanh.pop %v465
        %v535 = vtanh.pop %v467
        %v536 = vtanh.pop %v518
        %v537 = vtanh.pop %v520
        %s538 = scalar_lea.vmem %s1, 32
        %v539 = vld [vmem:[%s538] sm:$0xf]
        %v540 = vld [vmem:[%s538 + $0x4] sm:$0xf]
        %v541 = vld [vmem:[%s538 + $0x8] sm:$0xf]
        %v542 = vld [vmem:[%s538 + $0xc] sm:$0xf]
        %s543 = scalar_lea.vmem %s2, 64
        %v544 = vld [vmem:[%s543] sm:$0xff]
        %v545 = vld [vmem:[%s543 + $0x8] sm:$0xff]
        %v546 = vld [vmem:[%s543 + $0x10] sm:$0xff]
        %v547 = vld [vmem:[%s543 + $0x18] sm:$0xff]
        %v548 = vpack.c.bf16 %v526, %v522
        %v549 = vpack.c.bf16 %v527, %v523
        %v550 = vpack.c.bf16 %v528, %v524
        %v551 = vpack.c.bf16 %v529, %v525
        %v552 = vpack.c.bf16 %v534, %v530
        %v553 = vpack.c.bf16 %v535, %v531
        %v554 = vpack.c.bf16 %v536, %v532
        %v555 = vpack.c.bf16 %v537, %v533
        %557 = vset.pattern.permute.xlu0 0
        %558 = vperm.xlu0 %557, %v544
        %v559 = vpop.permute.xlu0 %558
        %562 = vset.pattern.permute.xlu0 0
        %563 = vperm.xlu0 %562, %v545
        %v564 = vpop.permute.xlu0 %563
        %567 = vset.pattern.permute.xlu0 0
        %568 = vperm.xlu0 %567, %v546
        %v569 = vpop.permute.xlu0 %568
        %572 = vset.pattern.permute.xlu0 0
        %573 = vperm.xlu0 %572, %v547
        %v574 = vpop.permute.xlu0 %573
        %v580 = vunpack.c.l.b16 %v539
        %v581 = vunpack.c.l.b16 %v540
        %v582 = vunpack.c.l.b16 %v541
        %v583 = vunpack.c.l.b16 %v542
        %v584 = vpack.c.b16 %v581, %v580
        %v585 = vpack.c.b16 %v583, %v582
        %v587 = vsel %vm409, %v584, 0
        %v590 = vsel %vm409, %v585, 0
        %592 = vmatprep.subr.bf16.mxu0 %v549
        %593 = vmatpush1.bf16.msra.mxu0 %v548
        %594 = vmatprep.subr.bf16.mxu0 %v553
        %595 = vmatpush1.bf16.msra.mxu0 %v552
        %596 = vmatprep.subr.bf16.mxu0 0
        %597 = vmatpush1.bf16.msra.mxu0 0
        %598 = vmatprep.subr.bf16.mxu0 0
        %599 = vmatpush1.bf16.msra.mxu0 0
        %600 = vmatprep.subr.bf16.mxu0 0
        %601 = vmatpush1.bf16.msra.mxu0 0
        %602 = vmatprep.subr.bf16.mxu0 0
        %603 = vmatpush1.bf16.msra.mxu0 0
        %604 = vmatprep.subr.bf16.mxu0 0
        %605 = vmatpush1.bf16.msra.mxu0 0
        %606 = vmatprep.subr.bf16.mxu0 0
        %607 = vmatpush1.bf16.msra.mxu0 0
        %608 = vmatprep.subr.bf16.mxu0 0
        %609 = vmatpush1.bf16.msra.mxu0 0
        %610 = vmatprep.subr.bf16.mxu0 0
        %611 = vmatpush1.bf16.msra.mxu0 0
        %612 = vmatprep.subr.bf16.mxu0 0
        %613 = vmatpush1.bf16.msra.mxu0 0
        %614 = vmatprep.subr.bf16.mxu0 0
        %615 = vmatpush1.bf16.msra.mxu0 0
        %616 = vmatprep.subr.bf16.mxu0 0
        %617 = vmatpush1.bf16.msra.mxu0 0
        %618 = vmatprep.subr.bf16.mxu0 0
        %619 = vmatpush1.bf16.msra.mxu0 0
        %620 = vmatprep.subr.bf16.mxu0 0
        %621 = vmatpush1.bf16.msra.mxu0 0
        %622 = vmatprep.subr.bf16.mxu0 0
        %623 = vmatpush1.bf16.msra.mxu0 0
        %624 = vmatprep.mubr.bf16.mxu0 0
        %625 = vmatmul.mubr.bf16.gmra.mrb[0].mxu0 %v587
        %v626 = vpop.f32.mrb[0].mxu0
        %v627 = vadd.f32 %v559, %v626
        %v628 = vpop.f32.mrb[0].mxu0
        %v629 = vadd.f32 %v559, %v628
        %v630 = vpop.f32.mrb[0].mxu0
        %v631 = vadd.f32 %v564, %v630
        %v632 = vpop.f32.mrb[0].mxu0
        %v633 = vadd.f32 %v564, %v632
        %634 = vmatprep.mubr.bf16.mxu0 0
        %635 = vmatmul.mubr.bf16.gmra.mrb[0].mxu0 %v590
        %v636 = vpop.f32.mrb[0].mxu0
        %v637 = vadd.f32 %v569, %v636
        %v638 = vpop.f32.mrb[0].mxu0
        %v639 = vadd.f32 %v569, %v638
        %v640 = vpop.f32.mrb[0].mxu0
        %v641 = vadd.f32 %v574, %v640
        %v642 = vpop.f32.mrb[0].mxu0
        %v643 = vadd.f32 %v574, %v642
        %644 = vdwg.mxu0
        %645 = vmatprep.subr.bf16.mxu0 %v551
        %646 = vmatpush1.bf16.msra.mxu0 %v550
        %647 = vmatprep.subr.bf16.mxu0 %v555
        %648 = vmatpush1.bf16.msra.mxu0 %v554
        %649 = vmatprep.subr.bf16.mxu0 0
        %650 = vmatpush1.bf16.msra.mxu0 0
        %651 = vmatprep.subr.bf16.mxu0 0
        %652 = vmatpush1.bf16.msra.mxu0 0
        %653 = vmatprep.subr.bf16.mxu0 0
        %654 = vmatpush1.bf16.msra.mxu0 0
        %655 = vmatprep.subr.bf16.mxu0 0
        %656 = vmatpush1.bf16.msra.mxu0 0
        %657 = vmatprep.subr.bf16.mxu0 0
        %658 = vmatpush1.bf16.msra.mxu0 0
        %659 = vmatprep.subr.bf16.mxu0 0
        %660 = vmatpush1.bf16.msra.mxu0 0
        %661 = vmatprep.subr.bf16.mxu0 0
        %662 = vmatpush1.bf16.msra.mxu0 0
        %663 = vmatprep.subr.bf16.mxu0 0
        %664 = vmatpush1.bf16.msra.mxu0 0
        %665 = vmatprep.subr.bf16.mxu0 0
        %666 = vmatpush1.bf16.msra.mxu0 0
        %667 = vmatprep.subr.bf16.mxu0 0
        %668 = vmatpush1.bf16.msra.mxu0 0
        %669 = vmatprep.subr.bf16.mxu0 0
        %670 = vmatpush1.bf16.msra.mxu0 0
        %671 = vmatprep.subr.bf16.mxu0 0
        %672 = vmatpush1.bf16.msra.mxu0 0
        %673 = vmatprep.subr.bf16.mxu0 0
        %674 = vmatpush1.bf16.msra.mxu0 0
        %675 = vmatprep.subr.bf16.mxu0 0
        %676 = vmatpush1.bf16.msra.mxu0 0
        %677 = vmatprep.mubr.bf16.mxu0 0
        %678 = vmatmul.mubr.bf16.gmra.mrb[0].mxu0 %v587
        %v679 = vpop.f32.mrb[0].mxu0
        %v680 = vadd.f32 %v559, %v679
        %v681 = vpop.f32.mrb[0].mxu0
        %v682 = vadd.f32 %v559, %v681
        %v683 = vpop.f32.mrb[0].mxu0
        %v684 = vadd.f32 %v564, %v683
        %v685 = vpop.f32.mrb[0].mxu0
        %v686 = vadd.f32 %v564, %v685
        %687 = vmatprep.mubr.bf16.mxu0 0
        %688 = vmatmul.mubr.bf16.gmra.mrb[0].mxu0 %v590
        %v689 = vpop.f32.mrb[0].mxu0
        %v690 = vadd.f32 %v569, %v689
        %v691 = vpop.f32.mrb[0].mxu0
        %v692 = vadd.f32 %v569, %v691
        %v693 = vpop.f32.mrb[0].mxu0
        %v694 = vadd.f32 %v574, %v693
        %v695 = vpop.f32.mrb[0].mxu0
        %v696 = vadd.f32 %v574, %v695
        %697 = vdwg.mxu0
        %v698 = vtanh.pop %v627
        %v699 = vtanh.pop %v629
        %v700 = vtanh.pop %v680
        %v701 = vtanh.pop %v682
        %v702 = vtanh.pop %v631
        %v703 = vtanh.pop %v633
        %v704 = vtanh.pop %v684
        %v705 = vtanh.pop %v686
        %v706 = vtanh.pop %v637
        %v707 = vtanh.pop %v639
        %v708 = vtanh.pop %v690
        %v709 = vtanh.pop %v692
        %v710 = vtanh.pop %v641
        %v711 = vtanh.pop %v643
        %v712 = vtanh.pop %v694
        %v713 = vtanh.pop %v696
        %s714 = scalar_lea.vmem %s1, 48
        %v715 = vld [vmem:[%s714] sm:$0xf]
        %v716 = vld [vmem:[%s714 + $0x4] sm:$0xf]
        %v717 = vld [vmem:[%s714 + $0x8] sm:$0xf]
        %v718 = vld [vmem:[%s714 + $0xc] sm:$0xf]
        %s719 = scalar_lea.vmem %s2, 96
        %v720 = vld [vmem:[%s719] sm:$0xff]
        %v721 = vld [vmem:[%s719 + $0x8] sm:$0xff]
        %v722 = vld [vmem:[%s719 + $0x10] sm:$0xff]
        %v723 = vld [vmem:[%s719 + $0x18] sm:$0xff]
        %v724 = vpack.c.bf16 %v702, %v698
        %v725 = vpack.c.bf16 %v703, %v699
        %v726 = vpack.c.bf16 %v704, %v700
        %v727 = vpack.c.bf16 %v705, %v701
        %v728 = vpack.c.bf16 %v710, %v706
        %v729 = vpack.c.bf16 %v711, %v707
        %v730 = vpack.c.bf16 %v712, %v708
        %v731 = vpack.c.bf16 %v713, %v709
        %733 = vset.pattern.permute.xlu0 0
        %734 = vperm.xlu0 %733, %v720
        %v735 = vpop.permute.xlu0 %734
        %738 = vset.pattern.permute.xlu0 0
        %739 = vperm.xlu0 %738, %v721
        %v740 = vpop.permute.xlu0 %739
        %742 = vset.pattern.permute.xlu0 0
        %743 = vperm.xlu0 %742, %v722
        %v744 = vpop.permute.xlu0 %743
        %746 = vset.pattern.permute.xlu0 0
        %747 = vperm.xlu0 %746, %v723
        %v748 = vpop.permute.xlu0 %747
        %v753 = vunpack.c.l.b16 %v715
        %v754 = vunpack.c.l.b16 %v716
        %v755 = vunpack.c.l.b16 %v717
        %v756 = vunpack.c.l.b16 %v718
        %v757 = vpack.c.b16 %v754, %v753
        %v758 = vpack.c.b16 %v756, %v755
        %v760 = vsel %vm409, %v757, 0
        %v763 = vsel %vm409, %v758, 0
        %765 = vmatprep.subr.bf16.mxu0 %v725
        %766 = vmatpush1.bf16.msra.mxu0 %v724
        %767 = vmatprep.subr.bf16.mxu0 %v729
        %768 = vmatpush1.bf16.msra.mxu0 %v728
        %769 = vmatprep.subr.bf16.mxu0 0
        %770 = vmatpush1.bf16.msra.mxu0 0
        %771 = vmatprep.subr.bf16.mxu0 0
        %772 = vmatpush1.bf16.msra.mxu0 0
        %773 = vmatprep.subr.bf16.mxu0 0
        %774 = vmatpush1.bf16.msra.mxu0 0
        %775 = vmatprep.subr.bf16.mxu0 0
        %776 = vmatpush1.bf16.msra.mxu0 0
        %777 = vmatprep.subr.bf16.mxu0 0
        %778 = vmatpush1.bf16.msra.mxu0 0
        %779 = vmatprep.subr.bf16.mxu0 0
        %780 = vmatpush1.bf16.msra.mxu0 0
        %781 = vmatprep.subr.bf16.mxu0 0
        %782 = vmatpush1.bf16.msra.mxu0 0
        %783 = vmatprep.subr.bf16.mxu0 0
        %784 = vmatpush1.bf16.msra.mxu0 0
        %785 = vmatprep.subr.bf16.mxu0 0
        %786 = vmatpush1.bf16.msra.mxu0 0
        %787 = vmatprep.subr.bf16.mxu0 0
        %788 = vmatpush1.bf16.msra.mxu0 0
        %789 = vmatprep.subr.bf16.mxu0 0
        %790 = vmatpush1.bf16.msra.mxu0 0
        %791 = vmatprep.subr.bf16.mxu0 0
        %792 = vmatpush1.bf16.msra.mxu0 0
        %793 = vmatprep.subr.bf16.mxu0 0
        %794 = vmatpush1.bf16.msra.mxu0 0
        %795 = vmatprep.subr.bf16.mxu0 0
        %796 = vmatpush1.bf16.msra.mxu0 0
        %797 = vmatprep.mubr.bf16.mxu0 0
        %798 = vmatmul.mubr.bf16.gmra.mrb[0].mxu0 %v760
        %v799 = vpop.f32.mrb[0].mxu0
        %v800 = vadd.f32 %v735, %v799
        %v801 = vpop.f32.mrb[0].mxu0
        %v802 = vadd.f32 %v735, %v801
        %v803 = vpop.f32.mrb[0].mxu0
        %v804 = vpop.f32.mrb[0].mxu0
        %805 = vmatprep.mubr.bf16.mxu0 0
        %806 = vmatmul.mubr.bf16.gmra.mrb[0].mxu0 %v763
        %v807 = vpop.f32.mrb[0].mxu0
        %v808 = vpop.f32.mrb[0].mxu0
        %v809 = vpop.f32.mrb[0].mxu0
        %v810 = vpop.f32.mrb[0].mxu0
        %811 = vdwg.mxu0
        %812 = vmatprep.subr.bf16.mxu0 %v727
        %813 = vmatpush1.bf16.msra.mxu0 %v726
        %814 = vmatprep.subr.bf16.mxu0 %v731
        %815 = vmatpush1.bf16.msra.mxu0 %v730
        %816 = vmatprep.subr.bf16.mxu0 0
        %817 = vmatpush1.bf16.msra.mxu0 0
        %818 = vmatprep.subr.bf16.mxu0 0
        %819 = vmatpush1.bf16.msra.mxu0 0
        %820 = vmatprep.subr.bf16.mxu0 0
        %821 = vmatpush1.bf16.msra.mxu0 0
        %822 = vmatprep.subr.bf16.mxu0 0
        %823 = vmatpush1.bf16.msra.mxu0 0
        %824 = vmatprep.subr.bf16.mxu0 0
        %825 = vmatpush1.bf16.msra.mxu0 0
        %826 = vmatprep.subr.bf16.mxu0 0
        %827 = vmatpush1.bf16.msra.mxu0 0
        %828 = vmatprep.subr.bf16.mxu0 0
        %829 = vmatpush1.bf16.msra.mxu0 0
        %830 = vmatprep.subr.bf16.mxu0 0
        %831 = vmatpush1.bf16.msra.mxu0 0
        %832 = vmatprep.subr.bf16.mxu0 0
        %833 = vmatpush1.bf16.msra.mxu0 0
        %834 = vmatprep.subr.bf16.mxu0 0
        %835 = vmatpush1.bf16.msra.mxu0 0
        %836 = vmatprep.subr.bf16.mxu0 0
        %837 = vmatpush1.bf16.msra.mxu0 0
        %838 = vmatprep.subr.bf16.mxu0 0
        %839 = vmatpush1.bf16.msra.mxu0 0
        %840 = vmatprep.subr.bf16.mxu0 0
        %841 = vmatpush1.bf16.msra.mxu0 0
        %842 = vmatprep.subr.bf16.mxu0 0
        %843 = vmatpush1.bf16.msra.mxu0 0
        %844 = vmatprep.mubr.bf16.mxu0 0
        %845 = vmatmul.mubr.bf16.gmra.mrb[0].mxu0 %v760
        %v846 = vpop.f32.mrb[0].mxu0
        %v847 = vadd.f32 %v735, %v846
        %v848 = vpop.f32.mrb[0].mxu0
        %v849 = vadd.f32 %v735, %v848
        %v850 = vpop.f32.mrb[0].mxu0
        %v851 = vpop.f32.mrb[0].mxu0
        %852 = vmatprep.mubr.bf16.mxu0 0
        %853 = vmatmul.mubr.bf16.gmra.mrb[0].mxu0 %v763
        %v854 = vpop.f32.mrb[0].mxu0
        %v855 = vpop.f32.mrb[0].mxu0
        %v856 = vpop.f32.mrb[0].mxu0
        %v857 = vpop.f32.mrb[0].mxu0
        %858 = vdwg.mxu0
        %v863 = vcombine.low %v800, %v802
        %v864 = vcombine.low %v847, %v849
        %v866 = vunpack.c.l.s4 1966171168
        %v867 = vunpack.c.0.s8 %v866
        %v868 = vlaneseq
        %v869 = vshrl.u32 %v868, 7
        %v870 = vsub.s32 %v867, %v869
        %v871 = vrot.slane %v863, %v870
        %v873 = vunpack.c.l.s4 1966171168
        %v874 = vunpack.c.0.s8 %v873
        %v875 = vlaneseq
        %v876 = vshrl.u32 %v875, 7
        %v877 = vsub.s32 %v874, %v876
        %v878 = vrot.slane %v864, %v877
        %v879 = vcombine.low %v871, %v878
        %v881 = vunpack.c.l.s4 1966171168
        %v882 = vunpack.c.0.s8 %v881
        %v883 = vlaneseq
        %v884 = vshrl.u32 %v883, 7
        %v885 = vsub.s32 %v882, %v884
        %v886 = vrot.slane %v879, %v885
        %v888 = vlaneseq
        %vm889 = vcmp.ge.s32.totalorder %v888, 0
        %vm890 = vcmp.lt.s32.totalorder %v888, 512
        %vm891 = vmand %vm889, %vm890
        %892 = vst.msk [vmem:[%s164] sm:$0xf] %vm891, %v886
        %s893 = sand.u32 %s93, 1
        %s894 = scalar_lea.sflag [#allocation3], %s893
        %s895 = sand.u32 %s93, 1
        %s896 = smul.addr %s895, 4
        %s897 = scalar_lea.vmem [#allocation2], %s896
        // Predicated region
        $region33: #{pinn_forward.1} parent=31 // pred_check
          %p898 = pneg %p103
        $region34: #{pinn_forward.1} parent=31 // pred_check_branch
          %900 = sbr.rel (%p898) target = $region36
        $region35: #{pinn_forward.1} parent=31 // pred_region
          %s901 = smul.u32 4, %s17
          %s903 = ssub.s32 64, 64
          %904 = vsyncadd %s894, %s903
          %s905 = smul.addr %s901, 16
          %s906 = scalar_lea.hbm %s3, %s905
          %s908 = sshll.u32 %s897, 4
          %s909 = int_to_ptr.vmem [resolvable:$true] %s908
          %911 = dma.vmem_to_hbm [thread:$0]  %s909, 64, %s906, %s894
        $region36: #{pinn_forward.1} parent=31 // pred_fallthru
          _
      $region32: #{pinn_forward.1} parent=5 // pred_fallthru
        _
      %p912 = scmp.le.s32.totalorder 2, %s12
      // Predicated region
      $region37: #{pinn_forward.1} parent=5 // pred_check
        %p913 = pneg %p912
      $region38: #{pinn_forward.1} parent=5 // pred_check_branch
        %915 = sbr.rel (%p913) target = $region40
      $region39: #{pinn_forward.1} parent=5 // pred_region
        %s916 = ssub.s32 %s12, 2
        // Predicated region
        $region41: #{pinn_forward.1} parent=39 // pred_check
          %p917 = pneg %p109
        $region42: #{pinn_forward.1} parent=39 // pred_check_branch
          %919 = sbr.rel (%p917) target = $region44
        $region43: #{pinn_forward.1} parent=39 // pred_region
          %s920 = sand.u32 %s94, 1
          %s921 = scalar_lea.sflag [#allocation3], %s920
          %s922 = sand.u32 %s94, 1
          %s923 = smul.addr %s922, 4
          %s924 = scalar_lea.vmem [#allocation2], %s923
          %925 = dma.done %s921, 64
        $region44: #{pinn_forward.1} parent=39 // pred_fallthru
          _
      $region40: #{pinn_forward.1} parent=5 // pred_fallthru
        _
    $region6: #{pinn_forward.1} parent=1 // loop_footer
      %s16 = sadd.s32 1, %s12
    $region7: #{pinn_forward.1} parent=1 // loop_footer_branch
      %11 = sbr.rel target = $region3
    $region8: #{pinn_forward.1} parent=1 // loop_exit
      _
    %926 = vsyncpa [#allocation3], 1
    %s927 = scalar_lea.sflag [#allocation3], 1
    %928 = vsyncpa %s927, 1

</llo_original>
